<compile_context>
chip_gen: v7x
topology: tpu7x:2x2x1
jax: 0.10.0
libtpu: 0.0.40
codegen_flags: <defaults>
</compile_context>

<pallas_src>
import functools

import jax
import jax.numpy as jnp
from jax.experimental import pallas as pl
from jax.experimental.pallas import tpu as pltpu


def _ceil_to(a, m):
    return (a + m - 1) // m * m


def _cdiv(a, b):
    return (a + b - 1) // b


try:  # physical VMEM per core (64 MiB on v7x, 128 MiB on v5e/v6e)
    _VMEM_CAP = int(pltpu.get_tpu_info().vmem_capacity_bytes)
except Exception:  # conservative fallback
    _VMEM_CAP = 64 * 1024 * 1024


def _tile_bytes(rows, cols, itemsize):
    # VMEM residency of one buffer of a (rows, cols) tile (internal (8,128) layout).
    return _ceil_to(max(rows, 1), 8) * _ceil_to(max(cols, 1), 128) * itemsize


def _choose_block_b(B, cap=512):
    """Batch tile: multiple of 8 (or full B); >= 2 grid steps when B allows (v7x megacore)."""
    if B <= 8:
        return B, B                      # block == full array dim -> no padding, 1 step
    B8 = _ceil_to(B, 8)
    n_steps = max(2, _cdiv(B8, cap))
    blk = _ceil_to(_cdiv(B8, n_steps), 8)
    return blk, _ceil_to(B, blk)


def _choose_block_h(H, cap=512):
    """Hidden tile: full H when small (no lane padding), else 128-aligned tiles of <= cap."""
    if H <= cap:
        return H, H                      # block == full array dim -> unpadded
    blk = cap                            # cap is a multiple of 128
    return blk, _ceil_to(_ceil_to(H, 128), blk)


def prepare_rbf_params(w, log_sigmas, *, mxu_dtype=jnp.float32, block_h_cap=512):
    """One-time preprocessing of MyLayer parameters (hoisted out of the forward path).

    w:          (H, D) RBF centers
    log_sigmas: (H,)
    Returns (wt_neg2, col, meta):
      wt_neg2: (D, Hp)  = -2 * w^T  (sign/scale folded into the MXU operand), mxu_dtype
      col:     (2, Hp)  f32, row 0 = ||w_h||^2, row 1 = exp(-2 * log_sigmas[h])
      meta:    dict(hidden=H, block_h=...)  static info for rbf_forward
    """
    H, D = w.shape
    block_h, Hp = _choose_block_h(H, block_h_cap)

    w32 = jnp.asarray(w, jnp.float32)
    ls32 = jnp.asarray(log_sigmas, jnp.float32)

    wt_neg2 = (-2.0 * w32.T).astype(mxu_dtype)            # (D, H)
    wsq = jnp.sum(w32 * w32, axis=-1)                     # (H,)
    inv_sigma_sq = jnp.exp(-2.0 * ls32)                   # (H,)
    col = jnp.stack([wsq, inv_sigma_sq], axis=0)          # (2, H), kept f32

    if Hp != H:  # zero padding is exact: padded columns give exp(0)=1 and are sliced off
        wt_neg2 = jnp.pad(wt_neg2, ((0, 0), (0, Hp - H)))
        col = jnp.pad(col, ((0, 0), (0, Hp - H)))

    return wt_neg2, col, {"hidden": H, "block_h": block_h}


def _rbf_kernel(x_ref, wt_ref, col_ref, o_ref):
    # x_ref:   (TB, D)   batch tile of inputs (caller dtype)
    # wt_ref:  (D, TH)   -2 * w^T tile (f32 or bf16)
    # col_ref: (2, TH)   row 0 = ||w||^2, row 1 = exp(-2*log_sigmas)   (f32)
    # o_ref:   (TB, TH)  output tile (caller dtype)
    x = x_ref[...]
    x32 = x.astype(jnp.float32)

    # MXU: (TB, D) @ (D, TH) with f32 accumulation; result is already -2 * x.w^T.
    xw_m2 = jnp.dot(x.astype(wt_ref.dtype), wt_ref[...],
                    preferred_element_type=jnp.float32)

    # Rank-1 corrections (VPU), kept in f32.
    x_sq = jnp.sum(x32 * x32, axis=-1, keepdims=True)      # (TB, 1)
    col = col_ref[...]
    w_sq = col[0:1, :]                                      # (1, TH)
    inv_sigma_sq = col[1:2, :]                              # (1, TH)

    sq = jnp.maximum(x_sq + w_sq + xw_m2, 0.0)              # guard catastrophic cancellation
    # exp(-(sqrt(sq)/sigma)^2) == exp(-sq * exp(-2*log_sigma))
    o_ref[...] = jnp.exp(-sq * inv_sigma_sq).astype(o_ref.dtype)


@functools.partial(jax.jit, static_argnames=("hidden", "block_h", "block_b_cap"))
def rbf_forward(data, wt_neg2, col, *, hidden, block_h, block_b_cap=512):
    """data: (B, D). Returns (B, hidden) in data.dtype, matching MyLayer.forward."""
    B, D = data.shape
    Dw, Hp = wt_neg2.shape
    assert D == Dw, "in_channel mismatch between data and prepared weights"
    assert Hp % block_h == 0

    blk_b, Bp = _choose_block_b(B, block_b_cap)
    x = data if Bp == B else jnp.pad(data, ((0, Bp - B), (0, 0)))   # only batch rows, never D

    n_b = Bp // blk_b
    n_h = Hp // block_h

    # Explicit VMEM budget: double-buffered tiles + headroom, capped below physical VMEM.
    est = 2 * (_tile_bytes(blk_b, D, x.dtype.itemsize)
               + _tile_bytes(D, block_h, wt_neg2.dtype.itemsize)
               + _tile_bytes(2, block_h, 4)
               + _tile_bytes(blk_b, block_h, data.dtype.itemsize))
    vmem_limit = int(min(max(est + (8 << 20), 32 << 20), int(_VMEM_CAP * 0.9)))

    out = pl.pallas_call(
        _rbf_kernel,
        out_shape=jax.ShapeDtypeStruct((Bp, Hp), data.dtype),
        grid_spec=pltpu.PrefetchScalarGridSpec(
            num_scalar_prefetch=0,
            grid=(n_b, n_h),
            in_specs=[
                pl.BlockSpec((blk_b, D), lambda i, j: (i, 0)),       # x tile
                pl.BlockSpec((D, block_h), lambda i, j: (0, j)),     # -2 * w^T tile
                pl.BlockSpec((2, block_h), lambda i, j: (0, j)),     # [||w||^2 ; 1/sigma^2]
            ],
            out_specs=pl.BlockSpec((blk_b, block_h), lambda i, j: (i, j)),
        ),
        compiler_params=pltpu.CompilerParams(
            dimension_semantics=("parallel", "parallel"),
            vmem_limit_bytes=vmem_limit,
        ),
    )(x, wt_neg2, col)

    if Bp != B or Hp != hidden:
        out = out[:B, :hidden]
    return out


def rbf_reference(data, w, log_sigmas):
    # Direct transcription of the PyTorch forward (broadcasted difference form).
    d = data.astype(jnp.float32)
    w32 = w.astype(jnp.float32)
    ls = log_sigmas.astype(jnp.float32)
    diff = d[:, None, :] - w32[None, :, :]
    dist = jnp.sqrt(jnp.sum(diff * diff, axis=-1)) / jnp.exp(ls)[None, :]
    return jnp.exp(-(dist * dist))


if __name__ == "__main__":
    key = jax.random.PRNGKey(0)
    k_data, k_w, k_data2, k_w2 = jax.random.split(key, 4)

    # --- Small shapes consistent with the module --------------------------------
    batch, in_channel, out_channel, rbf_init = 8, 16, 32, -1.0
    data = 0.3 * jax.random.normal(k_data, (batch, in_channel), dtype=jnp.float32)
    w = 0.1 * jax.random.normal(k_w, (out_channel, in_channel), dtype=jnp.float32)  # init.normal_(w, 0, 0.1)
    log_sigmas = jnp.full((out_channel,), rbf_init, dtype=jnp.float32)              # init.constant_(log_sigmas, rbf_init)

    wt, col, meta = prepare_rbf_params(w, log_sigmas)           # one-time (cached) weight prep
    y = jax.block_until_ready(rbf_forward(data, wt, col, **meta))
    y_ref = rbf_reference(data, w, log_sigmas)
    assert y.shape == (batch, out_channel)
    assert jnp.allclose(y, y_ref, atol=2e-5, rtol=1e-4), "f32 kernel mismatch vs reference"

    # Optional bf16 MXU operands (v6e/v7x fast path); rank-1 corrections stay f32.
    wt16, col16, meta16 = prepare_rbf_params(w, log_sigmas, mxu_dtype=jnp.bfloat16)
    y16 = jax.block_until_ready(rbf_forward(data, wt16, col16, **meta16))
    assert jnp.allclose(y16, y_ref, atol=5e-3, rtol=5e-3), "bf16-MXU kernel mismatch vs reference"

    # --- Tiled path: multi-block batch + hidden grid (still small) --------------
    B2, D2, H2 = 40, 32, 640
    data2 = 0.3 * jax.random.normal(k_data2, (B2, D2), dtype=jnp.float32)
    w2 = 0.1 * jax.random.normal(k_w2, (H2, D2), dtype=jnp.float32)
    ls2 = jnp.full((H2,), rbf_init, dtype=jnp.float32)
    wt2, col2, meta2 = prepare_rbf_params(w2, ls2)
    y2 = jax.block_until_ready(rbf_forward(data2, wt2, col2, **meta2))
    assert y2.shape == (B2, H2)
    assert jnp.allclose(y2, rbf_reference(data2, w2, ls2), atol=2e-5, rtol=1e-4), \
        "tiled kernel mismatch vs reference"

    print("KERNEL_OK")
</pallas_src>

<mosaic_0001>
module attributes {stable_mosaic.version = 11 : i64} {
  func.func @_rbf_kernel(%arg0: i32, %arg1: i32, %arg2: memref<8x16xf32, #tpu.memory_space<vmem>>, %arg3: memref<16x32xf32, #tpu.memory_space<vmem>>, %arg4: memref<2x32xf32, #tpu.memory_space<vmem>>, %arg5: memref<8x32xf32, #tpu.memory_space<vmem>>) attributes {dimension_semantics = [#tpu.dimension_semantics<parallel>, #tpu.dimension_semantics<parallel>], iteration_bounds = array<i64: 1, 1>, scalar_prefetch = 0 : i64, scratch_operands = 0 : i64, tpu.core_type = #tpu.core_type<tc>, window_params = [{transform_indices = @transform_0, window_bounds = array<i64: 8, 16>}, {transform_indices = @transform_1, window_bounds = array<i64: 16, 32>}, {transform_indices = @transform_2, window_bounds = array<i64: 2, 32>}, {transform_indices = @transform_3, window_bounds = array<i64: 8, 32>}]} {
    %c0 = arith.constant 0 : index
    %c0_0 = arith.constant 0 : index
    %0 = vector.load %arg2[%c0, %c0_0] : memref<8x16xf32, #tpu.memory_space<vmem>>, vector<8x16xf32>
    %c0_1 = arith.constant 0 : index
    %c0_2 = arith.constant 0 : index
    %1 = vector.load %arg3[%c0_1, %c0_2] : memref<16x32xf32, #tpu.memory_space<vmem>>, vector<16x32xf32>
    %cst = arith.constant dense<0.000000e+00> : vector<8x32xf32>
    %2 = tpu.matmul %0, %1, %cst {dimension_numbers = #tpu.dot_dimension_numbers<[1], [0], [0], [1], [0, 0, 1, 1], [], []>} : vector<8x16xf32>, vector<16x32xf32>, vector<8x32xf32> -> vector<8x32xf32>
    %3 = arith.mulf %0, %0 : vector<8x16xf32>
    %cst_3 = arith.constant dense<0.000000e+00> : vector<8xf32>
    %4 = vector.multi_reduction <add>, %3, %cst_3 [1] : vector<8x16xf32> to vector<8xf32>
    %5 = vector.shape_cast %4 : vector<8xf32> to vector<8x1xf32>
    %c0_4 = arith.constant 0 : index
    %c0_5 = arith.constant 0 : index
    %6 = vector.load %arg4[%c0_4, %c0_5] : memref<2x32xf32, #tpu.memory_space<vmem>>, vector<2x32xf32>
    %7 = vector.extract_strided_slice %6 {offsets = [0, 0], sizes = [1, 32], strides = [1, 1]} : vector<2x32xf32> to vector<1x32xf32>
    %8 = vector.extract_strided_slice %6 {offsets = [1, 0], sizes = [1, 32], strides = [1, 1]} : vector<2x32xf32> to vector<1x32xf32>
    %9 = vector.broadcast %5 : vector<8x1xf32> to vector<8x32xf32>
    %10 = vector.broadcast %7 : vector<1x32xf32> to vector<8x32xf32>
    %11 = arith.addf %9, %10 : vector<8x32xf32>
    %12 = arith.addf %11, %2 : vector<8x32xf32>
    %cst_6 = arith.constant 0.000000e+00 : f32
    %13 = vector.broadcast %cst_6 : f32 to vector<8x32xf32>
    %14 = arith.maximumf %12, %13 : vector<8x32xf32>
    %cst_7 = arith.constant 0.000000e+00 : f32
    %15 = vector.broadcast %cst_7 : f32 to vector<8x32xf32>
    %16 = arith.subf %15, %14 : vector<8x32xf32>
    %17 = vector.broadcast %8 : vector<1x32xf32> to vector<8x32xf32>
    %18 = arith.mulf %16, %17 : vector<8x32xf32>
    %19 = math.exp %18 : vector<8x32xf32>
    %c0_8 = arith.constant 0 : index
    %c0_9 = arith.constant 0 : index
    %20 = vector.load %arg5[%c0_8, %c0_9] : memref<8x32xf32, #tpu.memory_space<vmem>>, vector<8x32xf32>
    tpu.vector_store %arg5[%c0_8, %c0_9], %19 {strides = array<i32>} : memref<8x32xf32, #tpu.memory_space<vmem>>, vector<8x32xf32>,
    return
  }
  func.func @transform_0(%arg0: i32, %arg1: i32) -> (i32, i32) {
    %c0_i32 = arith.constant 0 : i32
    %c0_i32_0 = arith.constant 0 : i32
    return %arg0, %c0_i32 : i32, i32
  }
  func.func @transform_1(%arg0: i32, %arg1: i32) -> (i32, i32) {
    %c0_i32 = arith.constant 0 : i32
    %c0_i32_0 = arith.constant 0 : i32
    return %c0_i32, %arg1 : i32, i32
  }
  func.func @transform_2(%arg0: i32, %arg1: i32) -> (i32, i32) {
    %c0_i32 = arith.constant 0 : i32
    %c0_i32_0 = arith.constant 0 : i32
    return %c0_i32, %arg1 : i32, i32
  }
  func.func @transform_3(%arg0: i32, %arg1: i32) -> (i32, i32) {
    %c0_i32 = arith.constant 0 : i32
    return %arg0, %arg1 : i32, i32
  }
}

</mosaic_0001>

<llo_original>
// kernel: rbf_forward.1
$region0: #{rbf_forward.1}
  #allocation0 [shape = 'u32[]', space=smem, size = 0x4, offset = 0x4, fixed_abs, tag = 'smem constant byte address 0x4 - core index']
  #allocation1 [shape = 'u32[144,128]{1,0:T(1,128)}', space=vmem, size = 0x12000, scoped, tag = 'internal scratch']
  %s0 = inlined_call_operand.hbm [shape: f32[8,16], index: 0, kind: input, shape index: {}]
  %s1 = inlined_call_operand.hbm [shape: f32[16,32], index: 1, kind: input, shape index: {}]
  %s2 = inlined_call_operand.vmem [shape: f32[2,32], index: 2, kind: input, shape index: {}]
  %s3 = inlined_call_operand.hbm [shape: f32[8,32], index: 3, kind: output, shape index: {}]
  %s4 = sld [smem:[#allocation0]]
  $region30: #{rbf_forward.1} parent=0
    _
  %s6 = ssub.s32 1, %s4
  %s7 = scalar_select 0, %s6, %s4
  $region1: #{rbf_forward.1} parent=0
    #allocation2 [shape = 'u8[4096]{0}', space=vmem, size = 0x1000, scoped, tag = 'input window, operand 0, single buffered']
    #allocation3 [shape = 's32[1]{0}', space=sflag, size = 0x4, scoped, tag = 'scoped memory for rbf_forward.1']
    #allocation4 [shape = 's32[1]{0}', space=sflag, size = 0x4, scoped, tag = 'scoped memory for rbf_forward.1']
    #allocation5 [shape = 'u8[8192]{0}', space=vmem, size = 0x2000, scoped, tag = 'input window, operand 1, single buffered']
    #allocation6 [shape = 's32[1]{0}', space=sflag, size = 0x4, scoped, tag = 'scoped memory for rbf_forward.1']
    #allocation7 [shape = 'u8[4096]{0}', space=vmem, size = 0x1000, scoped, tag = 'output window, operand 0, single buffered']
    %8 = vsyncpa [#allocation3], 0
    %9 = vsyncpa [#allocation6], 0
    %10 = vsyncpa [#allocation4], 0
    // Predicated region
    $region2: #{rbf_forward.1} parent=1 // pred_check
      _
    $region3: #{rbf_forward.1} parent=1 // pred_check_branch
      %12 = sbr.rel (0) target = $region5
    $region4: #{rbf_forward.1} parent=1 // pred_region
      %s14 = ssub.s32 128, 128
      %15 = vsyncadd [#allocation3], %s14
      %s17 = sshll.u32 [#allocation2], 4
      %s18 = int_to_ptr.vmem [resolvable:$true] %s17
      %20 = dma.hbm_to_vmem [thread:$0]  %s0, 128, %s18, [#allocation3]
    $region5: #{rbf_forward.1} parent=1 // pred_fallthru
      _
    // Predicated region
    $region6: #{rbf_forward.1} parent=1 // pred_check
      _
    $region7: #{rbf_forward.1} parent=1 // pred_check_branch
      %22 = sbr.rel (0) target = $region9
    $region8: #{rbf_forward.1} parent=1 // pred_region
      %s24 = ssub.s32 256, 256
      %25 = vsyncadd [#allocation6], %s24
      %s26 = sshll.u32 [#allocation5], 4
      %s27 = int_to_ptr.vmem [resolvable:$true] %s26
      %32 = dma.hbm_to_vmem [thread:$0]  %s1, 256, %s27, [#allocation6], 128, 128, 8
    $region9: #{rbf_forward.1} parent=1 // pred_fallthru
      _
    // Predicated region
    $region10: #{rbf_forward.1} parent=1 // pred_check
      _
    $region11: #{rbf_forward.1} parent=1 // pred_check_branch
      %34 = sbr.rel (0) target = $region13
    $region12: #{rbf_forward.1} parent=1 // pred_region
      _
    $region13: #{rbf_forward.1} parent=1 // pred_fallthru
      _
    // Predicated region
    $region14: #{rbf_forward.1} parent=1 // pred_check
      _
    $region15: #{rbf_forward.1} parent=1 // pred_check_branch
      %36 = sbr.rel (0) target = $region17
    $region16: #{rbf_forward.1} parent=1 // pred_region
      %37 = dma.done [#allocation3], 128
    $region17: #{rbf_forward.1} parent=1 // pred_fallthru
      _
    // Predicated region
    $region18: #{rbf_forward.1} parent=1 // pred_check
      _
    $region19: #{rbf_forward.1} parent=1 // pred_check_branch
      %39 = sbr.rel (0) target = $region21
    $region20: #{rbf_forward.1} parent=1 // pred_region
      %40 = dma.done [#allocation6], 256
    $region21: #{rbf_forward.1} parent=1 // pred_fallthru
      _
    %v41 = vld [vmem:[#allocation2] sm:$0xff]
    %v42 = vld [vmem:[#allocation5] sm:$0xff]
    %v43 = vld [vmem:[#allocation5 + $0x8] sm:$0xff]
    %vm44 = vcmask 130048
    %v46 = vsel %vm44, %v41, 0
    %48 = vmatprep.subr.mxu0 0.0
    %49 = vmatpush1.msra.mxu0 %v42
    %50 = vmatprep.subr.mxu0 0.0
    %51 = vmatpush1.msra.mxu0 %v43
    %52 = vmatprep.subr.mxu0 0.0
    %53 = vmatpush1.msra.mxu0 0.0
    %54 = vmatprep.subr.mxu0 0.0
    %55 = vmatpush1.msra.mxu0 0.0
    %56 = vmatprep.subr.mxu0 0.0
    %57 = vmatpush1.msra.mxu0 0.0
    %58 = vmatprep.subr.mxu0 0.0
    %59 = vmatpush1.msra.mxu0 0.0
    %60 = vmatprep.subr.mxu0 0.0
    %61 = vmatpush1.msra.mxu0 0.0
    %62 = vmatprep.subr.mxu0 0.0
    %63 = vmatpush1.msra.mxu0 0.0
    %64 = vmatprep.subr.mxu0 0.0
    %65 = vmatpush1.msra.mxu0 0.0
    %66 = vmatprep.subr.mxu0 0.0
    %67 = vmatpush1.msra.mxu0 0.0
    %68 = vmatprep.subr.mxu0 0.0
    %69 = vmatpush1.msra.mxu0 0.0
    %70 = vmatprep.subr.mxu0 0.0
    %71 = vmatpush1.msra.mxu0 0.0
    %72 = vmatprep.subr.mxu0 0.0
    %73 = vmatpush1.msra.mxu0 0.0
    %74 = vmatprep.subr.mxu0 0.0
    %75 = vmatpush1.msra.mxu0 0.0
    %76 = vmatprep.subr.mxu0 0.0
    %77 = vmatpush1.msra.mxu0 0.0
    %78 = vmatprep.subr.mxu0 0.0
    %79 = vmatpush1.msra.mxu0 0.0
    %80 = vmatprep.subr.mxu0 0.0
    %81 = vmatpush1.msra.mxu0 0.0
    %82 = vmatprep.subr.mxu0 0.0
    %83 = vmatpush1.msra.mxu0 0.0
    %84 = vmatprep.subr.mxu0 0.0
    %85 = vmatpush1.msra.mxu0 0.0
    %86 = vmatprep.subr.mxu0 0.0
    %87 = vmatpush1.msra.mxu0 0.0
    %88 = vmatprep.subr.mxu0 0.0
    %89 = vmatpush1.msra.mxu0 0.0
    %90 = vmatprep.subr.mxu0 0.0
    %91 = vmatpush1.msra.mxu0 0.0
    %92 = vmatprep.subr.mxu0 0.0
    %93 = vmatpush1.msra.mxu0 0.0
    %94 = vmatprep.subr.mxu0 0.0
    %95 = vmatpush1.msra.mxu0 0.0
    %96 = vmatprep.subr.mxu0 0.0
    %97 = vmatpush1.msra.mxu0 0.0
    %98 = vmatprep.subr.mxu0 0.0
    %99 = vmatpush1.msra.mxu0 0.0
    %100 = vmatprep.subr.mxu0 0.0
    %101 = vmatpush1.msra.mxu0 0.0
    %102 = vmatprep.subr.mxu0 0.0
    %103 = vmatpush1.msra.mxu0 0.0
    %104 = vmatprep.subr.mxu0 0.0
    %105 = vmatpush1.msra.mxu0 0.0
    %106 = vmatprep.subr.mxu0 0.0
    %107 = vmatpush1.msra.mxu0 0.0
    %108 = vmatprep.subr.mxu0 0.0
    %109 = vmatpush1.msra.mxu0 0.0
    %110 = vmatprep.subr.mxu0 0.0
    %111 = vmatpush1.msra.mxu0 0.0
    %112 = vmatprep.mubr.f32.mxu0 0.0
    %113 = vmatmul.mubr.f32.gmra.mrb[0].mxu0 %v46
    %v114 = vpop.f32.mrb[0].mxu0
    %v115 = vadd.f32 0.0, %v114
    %v116 = vpop.f32.mrb[0].mxu0
    %117 = vdwg.mxu0
    %v118 = vmul.f32 %v41, %v41
    %v119 = vsel %vm44, %v118, 0.0
    %120 = vadd.xlane.f32.xlu0 %v119
    %v121 = vpop.xlane.xlu0 %120
    %v122 = vld [vmem:[%s2] sm:$0x3]
    %v123 = vlaneseq
    %v124 = vshrl.u32 %v123, 7
    %v125 = vsub.s32 0, %v124
    %v126 = vrot.slane %v122, %v125
    %v127 = vadd.f32 %v121, %v126
    %v128 = vadd.f32 %v127, %v115
    %v129 = vmax.f32 %v128, 0.0
    %v130 = vsub.f32 0.0, %v129
    %v131 = vlaneseq
    %v132 = vshrl.u32 %v131, 7
    %v133 = vsub.s32 1, %v132
    %v134 = vrot.slane %v122, %v133
    %v135 = vmul.f32 %v130, %v134
    %v136 = vmul.f32 %v135, 1.442695
    %v137 = vpow.pop %v136
    %vm138 = vcmask 261120
    %139 = vst.msk [vmem:[#allocation7] sm:$0xff] %vm138, %v137
    // Predicated region
    $region22: #{rbf_forward.1} parent=1 // pred_check
      _
    $region23: #{rbf_forward.1} parent=1 // pred_check_branch
      %141 = sbr.rel (0) target = $region25
    $region24: #{rbf_forward.1} parent=1 // pred_region
      %s143 = ssub.s32 128, 128
      %144 = vsyncadd [#allocation4], %s143
      %s146 = sshll.u32 [#allocation7], 4
      %s147 = int_to_ptr.vmem [resolvable:$true] %s146
      %149 = dma.vmem_to_hbm [thread:$0]  %s147, 128, %s3, [#allocation4]
    $region25: #{rbf_forward.1} parent=1 // pred_fallthru
      _
    // Predicated region
    $region26: #{rbf_forward.1} parent=1 // pred_check
      _
    $region27: #{rbf_forward.1} parent=1 // pred_check_branch
      %151 = sbr.rel (0) target = $region29
    $region28: #{rbf_forward.1} parent=1 // pred_region
      %152 = dma.done [#allocation4], 128
    $region29: #{rbf_forward.1} parent=1 // pred_fallthru
      _
    %153 = vsyncpa [#allocation3], 1
    %154 = vsyncpa [#allocation6], 1
    %155 = vsyncpa [#allocation4], 1

</llo_original>
